<compile_context>
chip_gen: v5e
topology: v5e:2x2
jax: 0.10.0
libtpu: 0.0.40
codegen_flags: <defaults>
</compile_context>

<pallas_src>
import jax
import jax.numpy as jnp
from jax import lax
from jax.experimental import pallas as pl
from jax.experimental.pallas import tpu as pltpu

SELU_ALPHA = 1.6732632423543772
SELU_SCALE = 1.0507009873554805


def _round_up(x, m):
    return (x + m - 1) // m * m


def sdl_kernel(x_ref, w_ref, b_ref, o_ref, acc_ref):
    # x_ref: (tb, tk) native dtype
    # w_ref: (tn, tk) native dtype (PyTorch (out, in) layout)
    # b_ref: (1, tn)  f32
    # o_ref: (tb, tn) output dtype
    # acc_ref: (tb, tn) f32 accumulator, resident across the K axis
    k = pl.program_id(2)

    @pl.when(k == 0)
    def _():
        acc_ref[...] = jnp.zeros_like(acc_ref)

    # MXU matmul with f32 accumulation; rhs contracted on its last dim so no
    # transposed weight copy is ever materialized in HBM.
    acc_ref[...] += lax.dot_general(
        x_ref[...], w_ref[...],
        dimension_numbers=(((1,), (1,)), ((), ())),
        preferred_element_type=jnp.float32,
    )

    @pl.when(k == pl.num_programs(2) - 1)
    def _():
        y = acc_ref[...] + b_ref[...]  # bias already f32, broadcast over rows
        # SELU: scale * where(y > 0, y, alpha * (exp(y) - 1)); clamp avoids inf
        # in the unselected branch and keeps everything on the EUP.
        neg = SELU_ALPHA * (jnp.exp(jnp.minimum(y, 0.0)) - 1.0)
        o_ref[...] = (SELU_SCALE * jnp.where(y > 0.0, y, neg)).astype(o_ref.dtype)


def sdl_forward(x, weight, bias, *, batch_tile=None, n_tile=None):
    """SDL forward (eval mode).

    x:      (B, in_dim)
    weight: (out_dim, in_dim)   -- PyTorch nn.Linear layout, NOT transposed
    bias:   (out_dim,)
    returns (B, out_dim) in x.dtype
    """
    B, in_dim = x.shape
    out_dim, in_dim_w = weight.shape
    assert in_dim == in_dim_w, "weight/in_dim mismatch"

    out_dtype = x.dtype
    sublane = 16 if out_dtype == jnp.bfloat16 else 8

    # --- pick lane/sublane-aligned tiles --------------------------------
    out_p = _round_up(out_dim, 128)          # lane-dense output stores
    if n_tile is None:
        n_tile = min(out_p, 512)             # multiple of 128
    n_tile = min(n_tile, out_p)
    out_p = _round_up(out_p, n_tile)

    B_p = _round_up(B, sublane)
    if batch_tile is None:
        batch_tile = min(B_p, 512)           # many grid steps -> pipelined DMA
    batch_tile = min(batch_tile, B_p)
    B_p = _round_up(B_p, batch_tile)

    # K (reduction) tiling: single block for typical SDL widths, 512-wide
    # tiles for very large in_dim so VMEM stays bounded.
    if in_dim <= 2048:
        k_tile = in_dim
        K_p = in_dim
    else:
        k_tile = 512
        K_p = _round_up(in_dim, k_tile)

    # --- pad operands (zeros contribute nothing to the matmul; padded rows/
    #     cols are sliced off afterwards) ---------------------------------
    if B_p != B or K_p != in_dim:
        x = jnp.pad(x, ((0, B_p - B), (0, K_p - in_dim)))
    if out_p != out_dim or K_p != in_dim:
        weight = jnp.pad(weight, ((0, out_p - out_dim), (0, K_p - in_dim)))
    if out_p != out_dim:
        bias = jnp.pad(bias, ((0, out_p - out_dim),))
    b2d = bias.reshape(1, out_p).astype(jnp.float32)   # cast once, outside grid

    grid = (B_p // batch_tile, out_p // n_tile, K_p // k_tile)

    # --- cost hint for the XLA scheduler ---------------------------------
    cost = pl.CostEstimate(
        flops=2 * B_p * K_p * out_p,
        transcendentals=B_p * out_p,
        bytes_accessed=(x.size * x.dtype.itemsize
                        + weight.size * weight.dtype.itemsize
                        + b2d.size * 4
                        + B_p * out_p * jnp.dtype(out_dtype).itemsize),
    )

    # --- VMEM budget: raise the scoped limit only if tiles demand it -----
    vmem_est = (2 * batch_tile * k_tile * x.dtype.itemsize           # x (dbl buf)
                + 2 * n_tile * k_tile * weight.dtype.itemsize        # W (dbl buf)
                + 2 * n_tile * 4                                     # bias
                + 2 * batch_tile * n_tile * jnp.dtype(out_dtype).itemsize  # out
                + batch_tile * n_tile * 4                            # f32 acc
                + batch_tile * n_tile * 4)                           # f32 temps
    vmem_limit = None
    if vmem_est > (30 << 20):
        vmem_limit = min(int(vmem_est * 12 // 10), 48 << 20)

    out_padded = pl.pallas_call(
        sdl_kernel,
        out_shape=jax.ShapeDtypeStruct((B_p, out_p), out_dtype),
        grid_spec=pltpu.PrefetchScalarGridSpec(
            num_scalar_prefetch=0,
            grid=grid,
            in_specs=[
                pl.BlockSpec((batch_tile, k_tile), lambda i, j, k: (i, k)),
                pl.BlockSpec((n_tile, k_tile), lambda i, j, k: (j, k)),
                pl.BlockSpec((1, n_tile), lambda i, j, k: (0, j)),
            ],
            out_specs=pl.BlockSpec((batch_tile, n_tile), lambda i, j, k: (i, j)),
            scratch_shapes=[pltpu.VMEM((batch_tile, n_tile), jnp.float32)],
        ),
        compiler_params=pltpu.CompilerParams(
            dimension_semantics=("parallel", "parallel", "arbitrary"),
            vmem_limit_bytes=vmem_limit,
        ),
        cost_estimate=cost,
    )(x, weight, b2d)

    return out_padded[:B, :out_dim]


def reference_sdl(x, weight, bias):
    y = x @ weight.T + bias
    return SELU_SCALE * jnp.where(y > 0.0, y, SELU_ALPHA * jnp.expm1(y))


if __name__ == "__main__":
    key = jax.random.PRNGKey(0)
    k_x, k_w, k_b = jax.random.split(key, 3)

    batch, in_dim, out_dim = 8, 32, 16

    x = jax.random.normal(k_x, (batch, in_dim), dtype=jnp.float32)
    # Deterministic init mimicking nn.Linear's uniform(-1/sqrt(in_dim), 1/sqrt(in_dim))
    bound = 1.0 / (in_dim ** 0.5)
    weight = jax.random.uniform(k_w, (out_dim, in_dim), dtype=jnp.float32,
                                minval=-bound, maxval=bound)
    bias = jax.random.uniform(k_b, (out_dim,), dtype=jnp.float32,
                              minval=-bound, maxval=bound)

    out = sdl_forward(x, weight, bias)
    out = jax.block_until_ready(out)

    ref = reference_sdl(x, weight, bias)
    assert out.shape == (batch, out_dim)
    assert jnp.allclose(out, ref, atol=1e-5, rtol=1e-5), "mismatch vs reference"

    print("KERNEL_OK")
</pallas_src>

<mosaic_0001>
module attributes {stable_mosaic.version = 11 : i64} {
  func.func @sdl_kernel(%arg0: i32, %arg1: i32, %arg2: i32, %arg3: memref<8x32xf32, #tpu.memory_space<vmem>>, %arg4: memref<128x32xf32, #tpu.memory_space<vmem>>, %arg5: memref<1x128xf32, #tpu.memory_space<vmem>>, %arg6: memref<8x128xf32, #tpu.memory_space<vmem>>, %arg7: memref<8x128xf32, #tpu.memory_space<vmem>>) attributes {dimension_semantics = [#tpu.dimension_semantics<parallel>, #tpu.dimension_semantics<parallel>, #tpu.dimension_semantics<arbitrary>], iteration_bounds = array<i64: 1, 1, 1>, scalar_prefetch = 0 : i64, scratch_operands = 1 : i64, tpu.core_type = #tpu.core_type<tc>, window_params = [{transform_indices = @transform_0, window_bounds = array<i64: 8, 32>}, {transform_indices = @transform_1, window_bounds = array<i64: 128, 32>}, {transform_indices = @transform_2, window_bounds = array<i64: 1, 128>}, {transform_indices = @transform_3, window_bounds = array<i64: 8, 128>}]} {
    %c0_i32 = arith.constant 0 : i32
    %0 = arith.cmpi eq, %arg2, %c0_i32 : i32
    %1 = arith.extui %0 : i1 to i32
    %c0_i32_0 = arith.constant 0 : i32
    %2 = arith.cmpi ne, %1, %c0_i32_0 : i32
    scf.if %2 {
      %cst_10 = arith.constant 0.000000e+00 : f32
      %12 = vector.broadcast %cst_10 : f32 to vector<8x128xf32>
      %c0_11 = arith.constant 0 : index
      %c0_12 = arith.constant 0 : index
      %13 = vector.load %arg7[%c0_11, %c0_12] : memref<8x128xf32, #tpu.memory_space<vmem>>, vector<8x128xf32>
      tpu.vector_store %arg7[%c0_11, %c0_12], %12 {strides = array<i32>} : memref<8x128xf32, #tpu.memory_space<vmem>>, vector<8x128xf32>,
    } else {
    }
    %c0 = arith.constant 0 : index
    %c0_1 = arith.constant 0 : index
    %3 = vector.load %arg7[%c0, %c0_1] : memref<8x128xf32, #tpu.memory_space<vmem>>, vector<8x128xf32>
    %c0_2 = arith.constant 0 : index
    %c0_3 = arith.constant 0 : index
    %4 = vector.load %arg3[%c0_2, %c0_3] : memref<8x32xf32, #tpu.memory_space<vmem>>, vector<8x32xf32>
    %c0_4 = arith.constant 0 : index
    %c0_5 = arith.constant 0 : index
    %5 = vector.load %arg4[%c0_4, %c0_5] : memref<128x32xf32, #tpu.memory_space<vmem>>, vector<128x32xf32>
    %cst = arith.constant dense<0.000000e+00> : vector<8x128xf32>
    %6 = tpu.matmul %4, %5, %cst {dimension_numbers = #tpu.dot_dimension_numbers<[1], [1], [0], [0], [0, 0, 1, 0], [], []>} : vector<8x32xf32>, vector<128x32xf32>, vector<8x128xf32> -> vector<8x128xf32>
    %7 = arith.addf %3, %6 : vector<8x128xf32>
    %c0_6 = arith.constant 0 : index
    %c0_7 = arith.constant 0 : index
    %8 = vector.load %arg7[%c0_6, %c0_7] : memref<8x128xf32, #tpu.memory_space<vmem>>, vector<8x128xf32>
    tpu.vector_store %arg7[%c0_6, %c0_7], %7 {strides = array<i32>} : memref<8x128xf32, #tpu.memory_space<vmem>>, vector<8x128xf32>,
    %c0_i32_8 = arith.constant 0 : i32
    %9 = arith.cmpi eq, %arg2, %c0_i32_8 : i32
    %10 = arith.extui %9 : i1 to i32
    %c0_i32_9 = arith.constant 0 : i32
    %11 = arith.cmpi ne, %10, %c0_i32_9 : i32
    scf.if %11 {
      %c0_10 = arith.constant 0 : index
      %c0_11 = arith.constant 0 : index
      %12 = vector.load %arg7[%c0_10, %c0_11] : memref<8x128xf32, #tpu.memory_space<vmem>>, vector<8x128xf32>
      %c0_12 = arith.constant 0 : index
      %c0_13 = arith.constant 0 : index
      %13 = vector.load %arg5[%c0_12, %c0_13] : memref<1x128xf32, #tpu.memory_space<vmem>>, vector<1x128xf32>
      %14 = vector.broadcast %13 : vector<1x128xf32> to vector<8x128xf32>
      %15 = arith.addf %12, %14 : vector<8x128xf32>
      %cst_14 = arith.constant 0.000000e+00 : f32
      %16 = vector.broadcast %cst_14 : f32 to vector<8x128xf32>
      %17 = arith.minimumf %15, %16 : vector<8x128xf32>
      %18 = math.exp %17 : vector<8x128xf32>
      %cst_15 = arith.constant 1.000000e+00 : f32
      %19 = vector.broadcast %cst_15 : f32 to vector<8x128xf32>
      %20 = arith.subf %18, %19 : vector<8x128xf32>
      %cst_16 = arith.constant 1.67326319 : f32
      %21 = vector.broadcast %cst_16 : f32 to vector<8x128xf32>
      %22 = arith.mulf %21, %20 : vector<8x128xf32>
      %cst_17 = arith.constant 0.000000e+00 : f32
      %23 = vector.broadcast %cst_17 : f32 to vector<8x128xf32>
      %24 = arith.cmpf ogt, %15, %23 : vector<8x128xf32>
      %25 = arith.select %24, %15, %22 : vector<8x128xi1>, vector<8x128xf32>
      %cst_18 = arith.constant 1.05070102 : f32
      %26 = vector.broadcast %cst_18 : f32 to vector<8x128xf32>
      %27 = arith.mulf %26, %25 : vector<8x128xf32>
      %c0_19 = arith.constant 0 : index
      %c0_20 = arith.constant 0 : index
      %28 = vector.load %arg6[%c0_19, %c0_20] : memref<8x128xf32, #tpu.memory_space<vmem>>, vector<8x128xf32>
      tpu.vector_store %arg6[%c0_19, %c0_20], %27 {strides = array<i32>} : memref<8x128xf32, #tpu.memory_space<vmem>>, vector<8x128xf32>,
    } else {
    }
    return
  }
  func.func @transform_0(%arg0: i32, %arg1: i32, %arg2: i32) -> (i32, i32) {
    %c0_i32 = arith.constant 0 : i32
    return %arg0, %arg2 : i32, i32
  }
  func.func @transform_1(%arg0: i32, %arg1: i32, %arg2: i32) -> (i32, i32) {
    %c0_i32 = arith.constant 0 : i32
    return %arg1, %arg2 : i32, i32
  }
  func.func @transform_2(%arg0: i32, %arg1: i32, %arg2: i32) -> (i32, i32) {
    %c0_i32 = arith.constant 0 : i32
    %c0_i32_0 = arith.constant 0 : i32
    return %c0_i32, %arg1 : i32, i32
  }
  func.func @transform_3(%arg0: i32, %arg1: i32, %arg2: i32) -> (i32, i32) {
    %c0_i32 = arith.constant 0 : i32
    return %arg0, %arg1 : i32, i32
  }
}

</mosaic_0001>

<llo_original>
// kernel: tpu_custom_call.1
$region0: #{tpu_custom_call.1}
  #allocation0 [shape = 'u32[]', space=smem, size = 0x4, offset = 0x4, fixed_abs, tag = 'smem constant byte address 0x4 - core index']
  #allocation1 [shape = 'u32[72,128]{1,0:T(1,128)}', space=vmem, size = 0x9000, scoped, tag = 'internal scratch']
  #allocation2 [shape = 'f32[8,128]{1,0:T(8,128)}', space=vmem, size = 0x1000, scoped, tag = 'scratch operand']
  %s0 = inlined_call_operand.vmem [shape: f32[8,32], index: 0, kind: input, shape index: {}]
  %s1 = inlined_call_operand.vmem [shape: f32[128,32], index: 1, kind: input, shape index: {}]
  %s2 = inlined_call_operand.vmem [shape: f32[1,128], index: 2, kind: input, shape index: {}]
  %s3 = inlined_call_operand.hbm [shape: f32[8,128], index: 3, kind: output, shape index: {}]
  %s4 = sld [smem:[#allocation0]]
  $region30: #{tpu_custom_call.1} parent=0
    _
  %s6 = ssub.s32 1, %s4
  %s7 = scalar_select 0, %s6, %s4
  $region1: #{tpu_custom_call.1} parent=0
    #allocation3 [shape = 'u8[4096]{0}', space=vmem, size = 0x1000, scoped, tag = 'output window, operand 0, single buffered']
    #allocation4 [shape = 's32[1]{0}', space=sflag, size = 0x4, scoped, tag = 'scoped memory for tpu_custom_call.1']
    %8 = vsyncpa [#allocation4], 0
    // Predicated region
    $region2: #{tpu_custom_call.1} parent=1 // pred_check
      _
    $region3: #{tpu_custom_call.1} parent=1 // pred_check_branch
      %10 = sbr.rel (0) target = $region5
    $region4: #{tpu_custom_call.1} parent=1 // pred_region
      _
    $region5: #{tpu_custom_call.1} parent=1 // pred_fallthru
      _
    // Predicated region
    $region6: #{tpu_custom_call.1} parent=1 // pred_check
      _
    $region7: #{tpu_custom_call.1} parent=1 // pred_check_branch
      %12 = sbr.rel (0) target = $region9
    $region8: #{tpu_custom_call.1} parent=1 // pred_region
      _
    $region9: #{tpu_custom_call.1} parent=1 // pred_fallthru
      _
    // Predicated region
    $region10: #{tpu_custom_call.1} parent=1 // pred_check
      _
    $region11: #{tpu_custom_call.1} parent=1 // pred_check_branch
      %14 = sbr.rel (0) target = $region13
    $region12: #{tpu_custom_call.1} parent=1 // pred_region
      _
    $region13: #{tpu_custom_call.1} parent=1 // pred_fallthru
      _
    %p15 = scmp.eq.s32.totalorder 0, 0
    // Predicated region
    $region14: #{tpu_custom_call.1} parent=1 // pred_check
      %p16 = pneg %p15
    $region15: #{tpu_custom_call.1} parent=1 // pred_check_branch
      %18 = sbr.rel (%p16) target = $region17
    $region16: #{tpu_custom_call.1} parent=1 // pred_region
      %19 = vst [vmem:[#allocation2] sm:$0xff] 0.0
    $region17: #{tpu_custom_call.1} parent=1 // pred_fallthru
      _
    %v20 = vld [vmem:[#allocation2] sm:$0xff]
    %v21 = vld [vmem:[%s0] sm:$0xff]
    %v22 = vld [vmem:[%s1] sm:$0xff]
    %v23 = vld [vmem:[%s1 + $0x8] sm:$0xff]
    %v24 = vld [vmem:[%s1 + $0x10] sm:$0xff]
    %v25 = vld [vmem:[%s1 + $0x18] sm:$0xff]
    %v26 = vld [vmem:[%s1 + $0x20] sm:$0xff]
    %v27 = vld [vmem:[%s1 + $0x28] sm:$0xff]
    %v28 = vld [vmem:[%s1 + $0x30] sm:$0xff]
    %v29 = vld [vmem:[%s1 + $0x38] sm:$0xff]
    %v30 = vld [vmem:[%s1 + $0x40] sm:$0xff]
    %v31 = vld [vmem:[%s1 + $0x48] sm:$0xff]
    %v32 = vld [vmem:[%s1 + $0x50] sm:$0xff]
    %v33 = vld [vmem:[%s1 + $0x58] sm:$0xff]
    %v34 = vld [vmem:[%s1 + $0x60] sm:$0xff]
    %v35 = vld [vmem:[%s1 + $0x68] sm:$0xff]
    %v36 = vld [vmem:[%s1 + $0x70] sm:$0xff]
    %v37 = vld [vmem:[%s1 + $0x78] sm:$0xff]
    %vm38 = vcmask 261120
    %v40 = vsel %vm38, %v21, 0
    %v43 = vsel %vm38, %v22, 0
    %v46 = vsel %vm38, %v23, 0
    %v49 = vsel %vm38, %v24, 0
    %v52 = vsel %vm38, %v25, 0
    %v55 = vsel %vm38, %v26, 0
    %v58 = vsel %vm38, %v27, 0
    %v61 = vsel %vm38, %v28, 0
    %v64 = vsel %vm38, %v29, 0
    %v67 = vsel %vm38, %v30, 0
    %v70 = vsel %vm38, %v31, 0
    %v73 = vsel %vm38, %v32, 0
    %v76 = vsel %vm38, %v33, 0
    %v79 = vsel %vm38, %v34, 0
    %v82 = vsel %vm38, %v35, 0
    %v85 = vsel %vm38, %v36, 0
    %v88 = vsel %vm38, %v37, 0
    %90 = vmatpush.xpose.msra.mxu0 %v88
    %91 = vmatpush.xpose.msra.mxu0 %v85
    %92 = vmatpush.xpose.msra.mxu0 %v82
    %93 = vmatpush.xpose.msra.mxu0 %v79
    %94 = vmatpush.xpose.msra.mxu0 %v76
    %95 = vmatpush.xpose.msra.mxu0 %v73
    %96 = vmatpush.xpose.msra.mxu0 %v70
    %97 = vmatpush.xpose.msra.mxu0 %v67
    %98 = vmatpush.xpose.msra.mxu0 %v64
    %99 = vmatpush.xpose.msra.mxu0 %v61
    %100 = vmatpush.xpose.msra.mxu0 %v58
    %101 = vmatpush.xpose.msra.mxu0 %v55
    %102 = vmatpush.xpose.msra.mxu0 %v52
    %103 = vmatpush.xpose.msra.mxu0 %v49
    %104 = vmatpush.xpose.msra.mxu0 %v46
    %105 = vmatpush.xpose.msra.mxu0 %v43
    %106 = vmatmul.f32.gmra.mxu0 %v40
    %v107 = vpop.f32.mrf.mxu0
    %v108 = vadd.f32 0.0, %v107
    %109 = vdwg.mxu0
    %v110 = vadd.f32 %v20, %v108
    %111 = vst [vmem:[#allocation2] sm:$0xff] %v110
    // Predicated region
    $region18: #{tpu_custom_call.1} parent=1 // pred_check
      %p112 = pneg %p15
    $region19: #{tpu_custom_call.1} parent=1 // pred_check_branch
      %114 = sbr.rel (%p112) target = $region21
    $region20: #{tpu_custom_call.1} parent=1 // pred_region
      %v115 = vld [vmem:[#allocation2] sm:$0xff]
      %v116 = vld [vmem:[%s2] sm:$0x1]
      %v118 = vperm.slane %v116, 0
      %v120 = vadd.f32 %v115, %v118
      %v121 = vmin.f32 %v120, 0.0
      %v122 = vmul.f32 %v121, 1.442695
      %v123 = vpow.pop %v122
      %v124 = vsub.f32 %v123, 1.0
      %v125 = vmul.f32 %v124, 1.6732632
      %vm126 = vcmp.gt.f32.partialorder %v120, 0.0
      %v127 = vsel %vm126, %v120, %v125
      %v128 = vmul.f32 %v127, 1.050701
      %129 = vst [vmem:[#allocation3] sm:$0xff] %v128
    $region21: #{tpu_custom_call.1} parent=1 // pred_fallthru
      _
    // Predicated region
    $region22: #{tpu_custom_call.1} parent=1 // pred_check
      _
    $region23: #{tpu_custom_call.1} parent=1 // pred_check_branch
      %131 = sbr.rel (0) target = $region25
    $region24: #{tpu_custom_call.1} parent=1 // pred_region
      %133 = vsyncadd [#allocation4], 0
      %s135 = sshll.u32 [#allocation3], 4
      %s136 = int_to_ptr.vmem [resolvable:$true] %s135
      %s137 = sshll.u32 %s3, 4
      %s138 = int_to_ptr.hbm [resolvable:$true] %s137
      %140 = dma.vmem_to_hbm [thread:$0]  %s136, 128, %s138, [#allocation4]
    $region25: #{tpu_custom_call.1} parent=1 // pred_fallthru
      _
    // Predicated region
    $region26: #{tpu_custom_call.1} parent=1 // pred_check
      _
    $region27: #{tpu_custom_call.1} parent=1 // pred_check_branch
      %142 = sbr.rel (0) target = $region29
    $region28: #{tpu_custom_call.1} parent=1 // pred_region
      %144 = dma.done [#allocation4], 128
    $region29: #{tpu_custom_call.1} parent=1 // pred_fallthru
      _
    %145 = vsyncpa [#allocation4], 1

</llo_original>
